<compile_context>
chip_gen: v7x
topology: tpu7x:2x2x1
jax: 0.10.0
libtpu: 0.0.40
codegen_flags: <defaults>
</compile_context>

<pallas_src>
import functools

import jax
import jax.numpy as jnp
from jax.experimental import pallas as pl
from jax.experimental.pallas import tpu as pltpu

GN_EPS = 1e-5  # torch.nn.GroupNorm default eps


def _sa_kernel(x_ref, sw_ref, sb_ref, gnw_ref, gnb_ref, cw_ref, cb_ref,
               msk_ref, o_ref, *, compute_dtype):
    """One grid step = nb batches x R rows x both shuffle slabs (p = 0, 1).

    x_ref  : (nb, 2, R, HW)   input view (b, p, row, hw)
    o_ref  : (nb, R, 2*HW)    lanes [0:HW] = p0, [HW:2HW] = p1
    gnw/gnb/cw/cb/msk : (2, R, 1) per-row folded params (gnw/gnb zeroed on
                        channel rows, cw/cb zeroed on spatial rows)
    sw/sb  : (1, HW) per-spatial-position params (spatial branch only)
    """
    hw = x_ref.shape[-1]
    inv_hw = jnp.float32(1.0 / hw)
    sw = sw_ref[...].astype(compute_dtype)                    # (1, HW)
    sb = sb_ref[...].astype(compute_dtype)

    # Static unroll over the two shuffle-destination slabs; processing them
    # one at a time also halves peak live full-block temporaries.
    for p in range(2):
        xp = x_ref[:, p, :, :]                                # (nb, R, HW)
        xf = xp.astype(jnp.float32)

        # One-pass moments, kept in f32.
        s1 = jnp.sum(xf, axis=-1, keepdims=True)              # (nb, R, 1)
        s2 = jnp.sum(xf * xf, axis=-1, keepdims=True)
        mean = s1 * inv_hw
        var = s2 * inv_hw - mean * mean
        rstd = jax.lax.rsqrt(var + GN_EPS)

        # Folded GroupNorm affine (== 0 on channel rows by construction).
        scale = rstd * gnw_ref[p]                              # (nb, R, 1)
        shift = gnb_ref[p] - mean * scale
        # Channel-branch gate input (== 0 on spatial rows by construction).
        chg = cw_ref[p] * mean + cb_ref[p]                     # (nb, R, 1)

        xc = xp.astype(compute_dtype)
        t = xc * scale.astype(compute_dtype) + shift.astype(compute_dtype)
        t = t * sw + sb                                        # spatial gate in
        gate_in = jnp.where(msk_ref[p] > 0.5, t, chg.astype(compute_dtype))
        gate = jax.nn.sigmoid(gate_in)

        # Direct lane-slice store (no concatenate).
        o_ref[:, :, p * hw:(p + 1) * hw] = (xc * gate).astype(o_ref.dtype)


def _largest_divisor_leq(n, cap):
    cap = int(max(1, min(n, cap)))
    for d in range(cap, 0, -1):
        if n % d == 0:
            return d
    return 1


def _pick_rows(n, cap):
    """Largest divisor of n that is a multiple of 8 (or n itself) and <= cap."""
    cands = [d for d in range(1, n + 1) if n % d == 0 and (d % 8 == 0 or d == n)]
    le = [d for d in cands if d <= cap]
    return max(le) if le else min(cands)


def _hw_config(x_dtype):
    """Generation-aware (block-bytes target, vmem limit, use-bf16-elementwise)."""
    kind = ""
    try:
        kind = jax.devices()[0].device_kind.lower()
    except Exception:
        pass
    vmem_cap = None
    try:
        vmem_cap = int(pltpu.get_tpu_info().vmem_capacity_bytes)
    except Exception:
        vmem_cap = None
    # v5e and older have no bf16 VALU/EUP -> keep elementwise math in f32 there.
    old_gen = any(t in kind for t in ("v2", "v3", "v4", "v5e", "v5 lite", "v5lite", "v5p"))
    bf16_ok = (x_dtype == jnp.bfloat16) and not old_gen
    if vmem_cap is None:                       # unknown -> conservative
        return 2 * 1024 * 1024, 32 * 1024 * 1024, bf16_ok
    if vmem_cap >= 100 * 1024 * 1024:          # 128 MiB class (v5e / v6e)
        return 6 * 1024 * 1024, 64 * 1024 * 1024, bf16_ok
    return 4 * 1024 * 1024, 40 * 1024 * 1024, bf16_ok   # 64 MiB class (v7x)


@functools.partial(jax.jit, static_argnames=("groups",))
def sa_layer2_forward(x, params, groups):
    """x: (b, c, h, w) NCHW.  Returns the sa_layer2 forward output."""
    b, c, h, w = x.shape
    G = int(groups)
    assert c % (2 * G) == 0, "channel must be divisible by 2*groups"

    cg = c // (2 * G)          # channels per half, per group
    hw = h * w
    NR = c // 2                # rows per shuffle slab

    target, vmem_limit, bf16_math = _hw_config(x.dtype)
    compute_dtype = jnp.bfloat16 if bf16_math else jnp.float32

    # ---- per-row folded parameter columns (tiny, shape (2, NR, 1)) ----------
    rows = jnp.arange(NR)
    kk = rows % cg                                 # index into per-channel params
    mm = rows // cg                                # q mod G
    half = (jnp.arange(2)[:, None] * G + mm[None, :]) % 2   # (2, NR): 0=chan,1=spat
    is_sp = half == 1
    gw = params["gn_w"].reshape(cg).astype(jnp.float32)[kk]
    gb = params["gn_b"].reshape(cg).astype(jnp.float32)[kk]
    cwv = params["cweight"].reshape(cg).astype(jnp.float32)[kk]
    cbv = params["cbias"].reshape(cg).astype(jnp.float32)[kk]
    gnw_col = jnp.where(is_sp, gw[None, :], 0.0)[..., None]
    gnb_col = jnp.where(is_sp, gb[None, :], 0.0)[..., None]
    cw_col = jnp.where(is_sp, 0.0, cwv[None, :])[..., None]
    cb_col = jnp.where(is_sp, 0.0, cbv[None, :])[..., None]
    msk_col = is_sp.astype(jnp.float32)[..., None]
    sw = params["sweight"].reshape(1, hw).astype(jnp.float32)
    sb = params["sbias"].reshape(1, hw).astype(jnp.float32)

    # ---- metadata-only input view: (b, p, row, hw) --------------------------
    xin = x.reshape(b, 2, NR, hw)

    # ---- block sizing --------------------------------------------------------
    row_bytes = 2 * hw * x.dtype.itemsize          # both p slabs of one row
    R = _pick_rows(NR, max(1, target // row_bytes))
    nb = _largest_divisor_leq(b, max(1, target // (row_bytes * R)))
    grid = (NR // R, b // nb)    # row-blocks outer -> param blocks reused across batch

    x_spec = pl.BlockSpec((nb, 2, R, hw), lambda ri, bi: (bi, 0, ri, 0))
    o_spec = pl.BlockSpec((nb, R, 2 * hw), lambda ri, bi: (bi, ri, 0))
    col_spec = pl.BlockSpec((2, R, 1), lambda ri, bi: (0, ri, 0))
    lane_spec = pl.BlockSpec((1, hw), lambda ri, bi: (0, 0))

    out = pl.pallas_call(
        functools.partial(_sa_kernel, compute_dtype=compute_dtype),
        grid=grid,
        in_specs=[x_spec, lane_spec, lane_spec, col_spec, col_spec, col_spec,
                  col_spec, col_spec],
        out_specs=o_spec,
        out_shape=jax.ShapeDtypeStruct((b, NR, 2 * hw), x.dtype),
        compiler_params=pltpu.CompilerParams(
            dimension_semantics=("parallel", "parallel"),
            vmem_limit_bytes=vmem_limit),
    )(xin, sw, sb, gnw_col, gnb_col, cw_col, cb_col, msk_col)

    # Metadata-only reshape: final channel = 2*row + p.
    return out.reshape(b, c, h, w)


# ---------------- pure-JAX reference (mirrors the PyTorch module) -------------
def sa_layer2_reference(x, params, groups):
    b, c, h, w = x.shape
    cg = c // (2 * groups)
    xg = x.reshape(b * groups, 2 * cg, h, w)
    x0, x1 = xg[:, :cg], xg[:, cg:]
    cw = params["cweight"].reshape(1, cg, 1, 1)
    cb = params["cbias"].reshape(1, cg, 1, 1)
    sw = params["sweight"].reshape(1, 1, h, w)
    sb = params["sbias"].reshape(1, 1, h, w)
    gnw = params["gn_w"].reshape(1, cg, 1, 1)
    gnb = params["gn_b"].reshape(1, cg, 1, 1)

    xn = jnp.mean(x0, axis=(2, 3), keepdims=True)
    xn = x0 * jax.nn.sigmoid(cw * xn + cb)

    mu = jnp.mean(x1, axis=(2, 3), keepdims=True)
    var = jnp.mean((x1 - mu) ** 2, axis=(2, 3), keepdims=True)
    xs = (x1 - mu) * jax.lax.rsqrt(var + GN_EPS) * gnw + gnb
    xs = x1 * jax.nn.sigmoid(sw * xs + sb)

    out = jnp.concatenate([xn, xs], axis=1).reshape(b, c, h, w)
    # channel_shuffle(out, 2)
    out = out.reshape(b, 2, c // 2, h, w).transpose(0, 2, 1, 3, 4).reshape(b, c, h, w)
    return out


if __name__ == "__main__":
    def run_case(key, b, c, h, w, groups):
        kx, kc, ks, kg1, kg2 = jax.random.split(key, 5)
        cg = c // (2 * groups)
        x = jax.random.normal(kx, (b, c, h, w), dtype=jnp.float32)
        params = {
            "cweight": 0.5 * jax.random.normal(kc, (1, cg, 1, 1), jnp.float32),
            "cbias":   jnp.ones((1, cg, 1, 1), jnp.float32),
            "sweight": 0.5 * jax.random.normal(ks, (1, 1, h, w), jnp.float32),
            "sbias":   jnp.ones((1, 1, h, w), jnp.float32),
            "gn_w":    1.0 + 0.1 * jax.random.normal(kg1, (cg,), jnp.float32),
            "gn_b":    0.1 * jax.random.normal(kg2, (cg,), jnp.float32),
        }
        out = jax.block_until_ready(sa_layer2_forward(x, params, groups))
        ref = jax.block_until_ready(sa_layer2_reference(x, params, groups))
        assert out.shape == (b, c, h, w), out.shape
        assert bool(jnp.all(jnp.isfinite(out)))
        err = float(jnp.max(jnp.abs(out - ref)))
        assert err < 1e-4, f"max abs err vs reference = {err}"

    key = jax.random.PRNGKey(0)
    k1, k2, k3 = jax.random.split(key, 3)
    run_case(k1, 2, 8, 16, 16, groups=2)     # cg=2, NR=4 (full-row tiny block path)
    run_case(k2, 2, 64, 16, 16, groups=4)    # cg=8, NR=32 (8-multiple row blocks)
    run_case(k3, 2, 12, 16, 16, groups=3)    # odd group count (p-dependent branch mask)
    print("KERNEL_OK")
</pallas_src>

<mosaic_0001>
module attributes {stable_mosaic.version = 11 : i64} {
  func.func @_sa_kernel(%arg0: i32, %arg1: i32, %arg2: memref<2x2x4x256xf32, #tpu.memory_space<vmem>>, %arg3: memref<1x256xf32, #tpu.memory_space<vmem>>, %arg4: memref<1x256xf32, #tpu.memory_space<vmem>>, %arg5: memref<2x4x1xf32, #tpu.memory_space<vmem>>, %arg6: memref<2x4x1xf32, #tpu.memory_space<vmem>>, %arg7: memref<2x4x1xf32, #tpu.memory_space<vmem>>, %arg8: memref<2x4x1xf32, #tpu.memory_space<vmem>>, %arg9: memref<2x4x1xf32, #tpu.memory_space<vmem>>, %arg10: memref<2x4x512xf32, #tpu.memory_space<vmem>>) attributes {dimension_semantics = [#tpu.dimension_semantics<parallel>, #tpu.dimension_semantics<parallel>], iteration_bounds = array<i64: 1, 1>, scalar_prefetch = 0 : i64, scratch_operands = 0 : i64, tpu.core_type = #tpu.core_type<tc>, window_params = [{transform_indices = @transform_0, window_bounds = array<i64: 2, 2, 4, 256>}, {pipeline_mode = #tpu.pipeline_mode<synchronous>, transform_indices = @transform_1, window_bounds = array<i64: 1, 256>}, {pipeline_mode = #tpu.pipeline_mode<synchronous>, transform_indices = @transform_2, window_bounds = array<i64: 1, 256>}, {transform_indices = @transform_3, window_bounds = array<i64: 2, 4, 1>}, {transform_indices = @transform_4, window_bounds = array<i64: 2, 4, 1>}, {transform_indices = @transform_5, window_bounds = array<i64: 2, 4, 1>}, {transform_indices = @transform_6, window_bounds = array<i64: 2, 4, 1>}, {transform_indices = @transform_7, window_bounds = array<i64: 2, 4, 1>}, {transform_indices = @transform_8, window_bounds = array<i64: 2, 4, 512>}]} {
    %c0 = arith.constant 0 : index
    %c0_0 = arith.constant 0 : index
    %0 = vector.load %arg3[%c0, %c0_0] : memref<1x256xf32, #tpu.memory_space<vmem>>, vector<1x256xf32>
    %c0_1 = arith.constant 0 : index
    %c0_2 = arith.constant 0 : index
    %1 = vector.load %arg4[%c0_1, %c0_2] : memref<1x256xf32, #tpu.memory_space<vmem>>, vector<1x256xf32>
    %c0_3 = arith.constant 0 : index
    %c0_4 = arith.constant 0 : index
    %c0_5 = arith.constant 0 : index
    %c0_6 = arith.constant 0 : index
    %2 = vector.load %arg2[%c0_3, %c0_4, %c0_5, %c0_6] : memref<2x2x4x256xf32, #tpu.memory_space<vmem>>, vector<2x1x4x256xf32>
    %3 = vector.shape_cast %2 : vector<2x1x4x256xf32> to vector<2x4x256xf32>
    %cst = arith.constant dense<0.000000e+00> : vector<2x4xf32>
    %4 = vector.multi_reduction <add>, %3, %cst [2] : vector<2x4x256xf32> to vector<2x4xf32>
    %5 = vector.shape_cast %4 : vector<2x4xf32> to vector<2x4x1xf32>
    %6 = arith.mulf %3, %3 : vector<2x4x256xf32>
    %cst_7 = arith.constant dense<0.000000e+00> : vector<2x4xf32>
    %7 = vector.multi_reduction <add>, %6, %cst_7 [2] : vector<2x4x256xf32> to vector<2x4xf32>
    %8 = vector.shape_cast %7 : vector<2x4xf32> to vector<2x4x1xf32>
    %cst_8 = arith.constant 3.906250e-03 : f32
    %9 = vector.broadcast %cst_8 : f32 to vector<2x4x1xf32>
    %10 = arith.mulf %5, %9 : vector<2x4x1xf32>
    %cst_9 = arith.constant 3.906250e-03 : f32
    %11 = vector.broadcast %cst_9 : f32 to vector<2x4x1xf32>
    %12 = arith.mulf %8, %11 : vector<2x4x1xf32>
    %13 = arith.mulf %10, %10 : vector<2x4x1xf32>
    %14 = arith.subf %12, %13 : vector<2x4x1xf32>
    %cst_10 = arith.constant 9.99999974E-6 : f32
    %15 = vector.broadcast %cst_10 : f32 to vector<2x4x1xf32>
    %16 = arith.addf %14, %15 : vector<2x4x1xf32>
    %17 = math.rsqrt %16 : vector<2x4x1xf32>
    %c0_11 = arith.constant 0 : index
    %c0_12 = arith.constant 0 : index
    %c0_13 = arith.constant 0 : index
    %18 = vector.load %arg5[%c0_11, %c0_12, %c0_13] : memref<2x4x1xf32, #tpu.memory_space<vmem>>, vector<1x4x1xf32>
    %19 = vector.shape_cast %18 : vector<1x4x1xf32> to vector<4x1xf32>
    %20 = vector.shape_cast %19 : vector<4x1xf32> to vector<1x4x1xf32>
    %21 = vector.broadcast %20 : vector<1x4x1xf32> to vector<2x4x1xf32>
    %22 = arith.mulf %17, %21 : vector<2x4x1xf32>
    %c0_14 = arith.constant 0 : index
    %c0_15 = arith.constant 0 : index
    %c0_16 = arith.constant 0 : index
    %23 = vector.load %arg6[%c0_14, %c0_15, %c0_16] : memref<2x4x1xf32, #tpu.memory_space<vmem>>, vector<1x4x1xf32>
    %24 = vector.shape_cast %23 : vector<1x4x1xf32> to vector<4x1xf32>
    %25 = arith.mulf %10, %22 : vector<2x4x1xf32>
    %26 = vector.shape_cast %24 : vector<4x1xf32> to vector<1x4x1xf32>
    %27 = vector.broadcast %26 : vector<1x4x1xf32> to vector<2x4x1xf32>
    %28 = arith.subf %27, %25 : vector<2x4x1xf32>
    %c0_17 = arith.constant 0 : index
    %c0_18 = arith.constant 0 : index
    %c0_19 = arith.constant 0 : index
    %29 = vector.load %arg7[%c0_17, %c0_18, %c0_19] : memref<2x4x1xf32, #tpu.memory_space<vmem>>, vector<1x4x1xf32>
    %30 = vector.shape_cast %29 : vector<1x4x1xf32> to vector<4x1xf32>
    %31 = vector.shape_cast %30 : vector<4x1xf32> to vector<1x4x1xf32>
    %32 = vector.broadcast %31 : vector<1x4x1xf32> to vector<2x4x1xf32>
    %33 = arith.mulf %32, %10 : vector<2x4x1xf32>
    %c0_20 = arith.constant 0 : index
    %c0_21 = arith.constant 0 : index
    %c0_22 = arith.constant 0 : index
    %34 = vector.load %arg8[%c0_20, %c0_21, %c0_22] : memref<2x4x1xf32, #tpu.memory_space<vmem>>, vector<1x4x1xf32>
    %35 = vector.shape_cast %34 : vector<1x4x1xf32> to vector<4x1xf32>
    %36 = vector.shape_cast %35 : vector<4x1xf32> to vector<1x4x1xf32>
    %37 = vector.broadcast %36 : vector<1x4x1xf32> to vector<2x4x1xf32>
    %38 = arith.addf %33, %37 : vector<2x4x1xf32>
    %39 = vector.broadcast %22 : vector<2x4x1xf32> to vector<2x4x256xf32>
    %40 = arith.mulf %3, %39 : vector<2x4x256xf32>
    %41 = vector.broadcast %28 : vector<2x4x1xf32> to vector<2x4x256xf32>
    %42 = arith.addf %40, %41 : vector<2x4x256xf32>
    %43 = vector.shape_cast %0 : vector<1x256xf32> to vector<1x1x256xf32>
    %44 = vector.broadcast %43 : vector<1x1x256xf32> to vector<2x4x256xf32>
    %45 = arith.mulf %42, %44 : vector<2x4x256xf32>
    %46 = vector.shape_cast %1 : vector<1x256xf32> to vector<1x1x256xf32>
    %47 = vector.broadcast %46 : vector<1x1x256xf32> to vector<2x4x256xf32>
    %48 = arith.addf %45, %47 : vector<2x4x256xf32>
    %c0_23 = arith.constant 0 : index
    %c0_24 = arith.constant 0 : index
    %c0_25 = arith.constant 0 : index
    %49 = vector.load %arg9[%c0_23, %c0_24, %c0_25] : memref<2x4x1xf32, #tpu.memory_space<vmem>>, vector<1x4x1xf32>
    %50 = vector.shape_cast %49 : vector<1x4x1xf32> to vector<4x1xf32>
    %cst_26 = arith.constant 5.000000e-01 : f32
    %51 = vector.broadcast %cst_26 : f32 to vector<4x1xf32>
    %52 = arith.cmpf ogt, %50, %51 : vector<4x1xf32>
    %53 = vector.shape_cast %52 : vector<4x1xi1> to vector<1x4x1xi1>
    %54 = vector.broadcast %53 : vector<1x4x1xi1> to vector<2x4x256xi1>
    %55 = vector.shape_cast %38 : vector<2x4x1xf32> to vector<2x4x1xf32>
    %56 = vector.broadcast %55 : vector<2x4x1xf32> to vector<2x4x256xf32>
    %57 = arith.select %54, %48, %56 : vector<2x4x256xi1>, vector<2x4x256xf32>
    %58 = arith.negf %57 : vector<2x4x256xf32>
    %59 = math.exp %58 : vector<2x4x256xf32>
    %cst_27 = arith.constant 1.000000e+00 : f32
    %60 = vector.broadcast %cst_27 : f32 to vector<2x4x256xf32>
    %61 = arith.addf %60, %59 : vector<2x4x256xf32>
    %62 = arith.divf %60, %61 : vector<2x4x256xf32>
    %63 = arith.mulf %3, %62 : vector<2x4x256xf32>
    %c0_28 = arith.constant 0 : index
    %c0_29 = arith.constant 0 : index
    %c0_30 = arith.constant 0 : index
    %64 = vector.load %arg10[%c0_28, %c0_29, %c0_30] : memref<2x4x512xf32, #tpu.memory_space<vmem>>, vector<2x4x256xf32>
    tpu.vector_store %arg10[%c0_28, %c0_29, %c0_30], %63 {strides = array<i32>} : memref<2x4x512xf32, #tpu.memory_space<vmem>>, vector<2x4x256xf32>,
    %c0_31 = arith.constant 0 : index
    %c1 = arith.constant 1 : index
    %c0_32 = arith.constant 0 : index
    %c0_33 = arith.constant 0 : index
    %65 = vector.load %arg2[%c0_31, %c1, %c0_32, %c0_33] : memref<2x2x4x256xf32, #tpu.memory_space<vmem>>, vector<2x1x4x256xf32>
    %66 = vector.shape_cast %65 : vector<2x1x4x256xf32> to vector<2x4x256xf32>
    %cst_34 = arith.constant dense<0.000000e+00> : vector<2x4xf32>
    %67 = vector.multi_reduction <add>, %66, %cst_34 [2] : vector<2x4x256xf32> to vector<2x4xf32>
    %68 = vector.shape_cast %67 : vector<2x4xf32> to vector<2x4x1xf32>
    %69 = arith.mulf %66, %66 : vector<2x4x256xf32>
    %cst_35 = arith.constant dense<0.000000e+00> : vector<2x4xf32>
    %70 = vector.multi_reduction <add>, %69, %cst_35 [2] : vector<2x4x256xf32> to vector<2x4xf32>
    %71 = vector.shape_cast %70 : vector<2x4xf32> to vector<2x4x1xf32>
    %cst_36 = arith.constant 3.906250e-03 : f32
    %72 = vector.broadcast %cst_36 : f32 to vector<2x4x1xf32>
    %73 = arith.mulf %68, %72 : vector<2x4x1xf32>
    %cst_37 = arith.constant 3.906250e-03 : f32
    %74 = vector.broadcast %cst_37 : f32 to vector<2x4x1xf32>
    %75 = arith.mulf %71, %74 : vector<2x4x1xf32>
    %76 = arith.mulf %73, %73 : vector<2x4x1xf32>
    %77 = arith.subf %75, %76 : vector<2x4x1xf32>
    %cst_38 = arith.constant 9.99999974E-6 : f32
    %78 = vector.broadcast %cst_38 : f32 to vector<2x4x1xf32>
    %79 = arith.addf %77, %78 : vector<2x4x1xf32>
    %80 = math.rsqrt %79 : vector<2x4x1xf32>
    %c1_39 = arith.constant 1 : index
    %c0_40 = arith.constant 0 : index
    %c0_41 = arith.constant 0 : index
    %81 = vector.load %arg5[%c1_39, %c0_40, %c0_41] : memref<2x4x1xf32, #tpu.memory_space<vmem>>, vector<1x4x1xf32>
    %82 = vector.shape_cast %81 : vector<1x4x1xf32> to vector<4x1xf32>
    %83 = vector.shape_cast %82 : vector<4x1xf32> to vector<1x4x1xf32>
    %84 = vector.broadcast %83 : vector<1x4x1xf32> to vector<2x4x1xf32>
    %85 = arith.mulf %80, %84 : vector<2x4x1xf32>
    %c1_42 = arith.constant 1 : index
    %c0_43 = arith.constant 0 : index
    %c0_44 = arith.constant 0 : index
    %86 = vector.load %arg6[%c1_42, %c0_43, %c0_44] : memref<2x4x1xf32, #tpu.memory_space<vmem>>, vector<1x4x1xf32>
    %87 = vector.shape_cast %86 : vector<1x4x1xf32> to vector<4x1xf32>
    %88 = arith.mulf %73, %85 : vector<2x4x1xf32>
    %89 = vector.shape_cast %87 : vector<4x1xf32> to vector<1x4x1xf32>
    %90 = vector.broadcast %89 : vector<1x4x1xf32> to vector<2x4x1xf32>
    %91 = arith.subf %90, %88 : vector<2x4x1xf32>
    %c1_45 = arith.constant 1 : index
    %c0_46 = arith.constant 0 : index
    %c0_47 = arith.constant 0 : index
    %92 = vector.load %arg7[%c1_45, %c0_46, %c0_47] : memref<2x4x1xf32, #tpu.memory_space<vmem>>, vector<1x4x1xf32>
    %93 = vector.shape_cast %92 : vector<1x4x1xf32> to vector<4x1xf32>
    %94 = vector.shape_cast %93 : vector<4x1xf32> to vector<1x4x1xf32>
    %95 = vector.broadcast %94 : vector<1x4x1xf32> to vector<2x4x1xf32>
    %96 = arith.mulf %95, %73 : vector<2x4x1xf32>
    %c1_48 = arith.constant 1 : index
    %c0_49 = arith.constant 0 : index
    %c0_50 = arith.constant 0 : index
    %97 = vector.load %arg8[%c1_48, %c0_49, %c0_50] : memref<2x4x1xf32, #tpu.memory_space<vmem>>, vector<1x4x1xf32>
    %98 = vector.shape_cast %97 : vector<1x4x1xf32> to vector<4x1xf32>
    %99 = vector.shape_cast %98 : vector<4x1xf32> to vector<1x4x1xf32>
    %100 = vector.broadcast %99 : vector<1x4x1xf32> to vector<2x4x1xf32>
    %101 = arith.addf %96, %100 : vector<2x4x1xf32>
    %102 = vector.broadcast %85 : vector<2x4x1xf32> to vector<2x4x256xf32>
    %103 = arith.mulf %66, %102 : vector<2x4x256xf32>
    %104 = vector.broadcast %91 : vector<2x4x1xf32> to vector<2x4x256xf32>
    %105 = arith.addf %103, %104 : vector<2x4x256xf32>
    %106 = vector.shape_cast %0 : vector<1x256xf32> to vector<1x1x256xf32>
    %107 = vector.broadcast %106 : vector<1x1x256xf32> to vector<2x4x256xf32>
    %108 = arith.mulf %105, %107 : vector<2x4x256xf32>
    %109 = vector.shape_cast %1 : vector<1x256xf32> to vector<1x1x256xf32>
    %110 = vector.broadcast %109 : vector<1x1x256xf32> to vector<2x4x256xf32>
    %111 = arith.addf %108, %110 : vector<2x4x256xf32>
    %c1_51 = arith.constant 1 : index
    %c0_52 = arith.constant 0 : index
    %c0_53 = arith.constant 0 : index
    %112 = vector.load %arg9[%c1_51, %c0_52, %c0_53] : memref<2x4x1xf32, #tpu.memory_space<vmem>>, vector<1x4x1xf32>
    %113 = vector.shape_cast %112 : vector<1x4x1xf32> to vector<4x1xf32>
    %cst_54 = arith.constant 5.000000e-01 : f32
    %114 = vector.broadcast %cst_54 : f32 to vector<4x1xf32>
    %115 = arith.cmpf ogt, %113, %114 : vector<4x1xf32>
    %116 = vector.shape_cast %115 : vector<4x1xi1> to vector<1x4x1xi1>
    %117 = vector.broadcast %116 : vector<1x4x1xi1> to vector<2x4x256xi1>
    %118 = vector.shape_cast %101 : vector<2x4x1xf32> to vector<2x4x1xf32>
    %119 = vector.broadcast %118 : vector<2x4x1xf32> to vector<2x4x256xf32>
    %120 = arith.select %117, %111, %119 : vector<2x4x256xi1>, vector<2x4x256xf32>
    %121 = arith.negf %120 : vector<2x4x256xf32>
    %122 = math.exp %121 : vector<2x4x256xf32>
    %cst_55 = arith.constant 1.000000e+00 : f32
    %123 = vector.broadcast %cst_55 : f32 to vector<2x4x256xf32>
    %124 = arith.addf %123, %122 : vector<2x4x256xf32>
    %125 = arith.divf %123, %124 : vector<2x4x256xf32>
    %126 = arith.mulf %66, %125 : vector<2x4x256xf32>
    %c0_56 = arith.constant 0 : index
    %c0_57 = arith.constant 0 : index
    %c256 = arith.constant 256 : index
    %127 = vector.load %arg10[%c0_56, %c0_57, %c256] : memref<2x4x512xf32, #tpu.memory_space<vmem>>, vector<2x4x256xf32>
    tpu.vector_store %arg10[%c0_56, %c0_57, %c256], %126 {strides = array<i32>} : memref<2x4x512xf32, #tpu.memory_space<vmem>>, vector<2x4x256xf32>,
    return
  }
  func.func @transform_0(%arg0: i32, %arg1: i32) -> (i32, i32, i32, i32) {
    %c0_i32 = arith.constant 0 : i32
    %c0_i32_0 = arith.constant 0 : i32
    %c0_i32_1 = arith.constant 0 : i32
    return %arg1, %c0_i32, %arg0, %c0_i32_0 : i32, i32, i32, i32
  }
  func.func @transform_1(%arg0: i32, %arg1: i32) -> (i32, i32) {
    %c0_i32 = arith.constant 0 : i32
    %c0_i32_0 = arith.constant 0 : i32
    %c0_i32_1 = arith.constant 0 : i32
    return %c0_i32, %c0_i32_0 : i32, i32
  }
  func.func @transform_2(%arg0: i32, %arg1: i32) -> (i32, i32) {
    %c0_i32 = arith.constant 0 : i32
    %c0_i32_0 = arith.constant 0 : i32
    %c0_i32_1 = arith.constant 0 : i32
    return %c0_i32, %c0_i32_0 : i32, i32
  }
  func.func @transform_3(%arg0: i32, %arg1: i32) -> (i32, i32, i32) {
    %c0_i32 = arith.constant 0 : i32
    %c0_i32_0 = arith.constant 0 : i32
    %c0_i32_1 = arith.constant 0 : i32
    return %c0_i32, %arg0, %c0_i32_0 : i32, i32, i32
  }
  func.func @transform_4(%arg0: i32, %arg1: i32) -> (i32, i32, i32) {
    %c0_i32 = arith.constant 0 : i32
    %c0_i32_0 = arith.constant 0 : i32
    %c0_i32_1 = arith.constant 0 : i32
    return %c0_i32, %arg0, %c0_i32_0 : i32, i32, i32
  }
  func.func @transform_5(%arg0: i32, %arg1: i32) -> (i32, i32, i32) {
    %c0_i32 = arith.constant 0 : i32
    %c0_i32_0 = arith.constant 0 : i32
    %c0_i32_1 = arith.constant 0 : i32
    return %c0_i32, %arg0, %c0_i32_0 : i32, i32, i32
  }
  func.func @transform_6(%arg0: i32, %arg1: i32) -> (i32, i32, i32) {
    %c0_i32 = arith.constant 0 : i32
    %c0_i32_0 = arith.constant 0 : i32
    %c0_i32_1 = arith.constant 0 : i32
    return %c0_i32, %arg0, %c0_i32_0 : i32, i32, i32
  }
  func.func @transform_7(%arg0: i32, %arg1: i32) -> (i32, i32, i32) {
    %c0_i32 = arith.constant 0 : i32
    %c0_i32_0 = arith.constant 0 : i32
    %c0_i32_1 = arith.constant 0 : i32
    return %c0_i32, %arg0, %c0_i32_0 : i32, i32, i32
  }
  func.func @transform_8(%arg0: i32, %arg1: i32) -> (i32, i32, i32) {
    %c0_i32 = arith.constant 0 : i32
    %c0_i32_0 = arith.constant 0 : i32
    return %arg1, %arg0, %c0_i32 : i32, i32, i32
  }
}

</mosaic_0001>

<llo_original>
// kernel: sa_layer2_forward.1
$region0: #{sa_layer2_forward.1}
  #allocation0 [shape = 'u32[]', space=smem, size = 0x4, offset = 0x4, fixed_abs, tag = 'smem constant byte address 0x4 - core index']
  #allocation1 [shape = 'u32[144,128]{1,0:T(1,128)}', space=vmem, size = 0x12000, scoped, tag = 'internal scratch']
  %s0 = inlined_call_operand.vmem [shape: f32[2,2,4,256], index: 0, kind: input, shape index: {}]
  %s1 = inlined_call_operand.vmem [shape: f32[1,256], index: 1, kind: input, shape index: {}]
  %s2 = inlined_call_operand.vmem [shape: f32[1,256], index: 2, kind: input, shape index: {}]
  %s3 = inlined_call_operand.vmem [shape: f32[2,4,1], index: 3, kind: input, shape index: {}]
  %s4 = inlined_call_operand.vmem [shape: f32[2,4,1], index: 4, kind: input, shape index: {}]
  %s5 = inlined_call_operand.vmem [shape: f32[2,4,1], index: 5, kind: input, shape index: {}]
  %s6 = inlined_call_operand.vmem [shape: f32[2,4,1], index: 6, kind: input, shape index: {}]
  %s7 = inlined_call_operand.vmem [shape: f32[2,4,1], index: 7, kind: input, shape index: {}]
  %s8 = inlined_call_operand.vmem [shape: f32[2,4,512], index: 8, kind: output, shape index: {}]
  %s9 = sld [smem:[#allocation0]]
  $region42: #{sa_layer2_forward.1} parent=0
    _
  %s11 = ssub.s32 1, %s9
  %s12 = scalar_select 0, %s11, %s9
  // Predicated region
  $region2: #{sa_layer2_forward.1} parent=0 // pred_check
    _
  $region3: #{sa_layer2_forward.1} parent=0 // pred_check_branch
    %14 = sbr.rel (0) target = $region5
  $region4: #{sa_layer2_forward.1} parent=0 // pred_region
    _
  $region5: #{sa_layer2_forward.1} parent=0 // pred_fallthru
    _
  // Predicated region
  $region6: #{sa_layer2_forward.1} parent=0 // pred_check
    _
  $region7: #{sa_layer2_forward.1} parent=0 // pred_check_branch
    %16 = sbr.rel (0) target = $region9
  $region8: #{sa_layer2_forward.1} parent=0 // pred_region
    _
  $region9: #{sa_layer2_forward.1} parent=0 // pred_fallthru
    _
  // Predicated region
  $region10: #{sa_layer2_forward.1} parent=0 // pred_check
    _
  $region11: #{sa_layer2_forward.1} parent=0 // pred_check_branch
    %18 = sbr.rel (0) target = $region13
  $region12: #{sa_layer2_forward.1} parent=0 // pred_region
    _
  $region13: #{sa_layer2_forward.1} parent=0 // pred_fallthru
    _
  // Predicated region
  $region14: #{sa_layer2_forward.1} parent=0 // pred_check
    _
  $region15: #{sa_layer2_forward.1} parent=0 // pred_check_branch
    %20 = sbr.rel (0) target = $region17
  $region16: #{sa_layer2_forward.1} parent=0 // pred_region
    _
  $region17: #{sa_layer2_forward.1} parent=0 // pred_fallthru
    _
  // Predicated region
  $region18: #{sa_layer2_forward.1} parent=0 // pred_check
    _
  $region19: #{sa_layer2_forward.1} parent=0 // pred_check_branch
    %22 = sbr.rel (0) target = $region21
  $region20: #{sa_layer2_forward.1} parent=0 // pred_region
    _
  $region21: #{sa_layer2_forward.1} parent=0 // pred_fallthru
    _
  // Predicated region
  $region22: #{sa_layer2_forward.1} parent=0 // pred_check
    _
  $region23: #{sa_layer2_forward.1} parent=0 // pred_check_branch
    %24 = sbr.rel (0) target = $region25
  $region24: #{sa_layer2_forward.1} parent=0 // pred_region
    _
  $region25: #{sa_layer2_forward.1} parent=0 // pred_fallthru
    _
  // Predicated region
  $region26: #{sa_layer2_forward.1} parent=0 // pred_check
    _
  $region27: #{sa_layer2_forward.1} parent=0 // pred_check_branch
    %26 = sbr.rel (0) target = $region29
  $region28: #{sa_layer2_forward.1} parent=0 // pred_region
    _
  $region29: #{sa_layer2_forward.1} parent=0 // pred_fallthru
    _
  // Predicated region
  $region30: #{sa_layer2_forward.1} parent=0 // pred_check
    _
  $region31: #{sa_layer2_forward.1} parent=0 // pred_check_branch
    %28 = sbr.rel (0) target = $region33
  $region32: #{sa_layer2_forward.1} parent=0 // pred_region
    _
  $region33: #{sa_layer2_forward.1} parent=0 // pred_fallthru
    _
  %v29 = vld [vmem:[%s1] sm:$0x3]
  %v30 = vld [vmem:[%s2] sm:$0x3]
  %v31 = vld [vmem:[%s0] sm:$0xff]
  %v32 = vld [vmem:[%s0 + $0x10] sm:$0xff]
  %v35 = vcombine.high %v31, %v31
  %v36 = vcombine.high %v32, %v32
  %vm39 = vcmask 1043456
  %v40 = vsel %vm39, %v31, 0.0
  %v41 = vsel %vm39, %v35, 0.0
  %v42 = vadd.f32 %v40, %v41
  %43 = vadd.xlane.f32.xlu0 %v42
  %v44 = vpop.xlane.xlu0 %43
  %v45 = vsel %vm39, %v32, 0.0
  %v46 = vsel %vm39, %v36, 0.0
  %v47 = vadd.f32 %v45, %v46
  %48 = vadd.xlane.f32.xlu0 %v47
  %v49 = vpop.xlane.xlu0 %48
  %v50 = vmul.f32 %v31, %v31
  %v51 = vmul.f32 %v32, %v32
  %v54 = vcombine.high %v50, %v50
  %v55 = vcombine.high %v51, %v51
  %v58 = vsel %vm39, %v50, 0.0
  %v59 = vsel %vm39, %v54, 0.0
  %v60 = vadd.f32 %v58, %v59
  %61 = vadd.xlane.f32.xlu0 %v60
  %v62 = vpop.xlane.xlu0 %61
  %v63 = vsel %vm39, %v51, 0.0
  %v64 = vsel %vm39, %v55, 0.0
  %v65 = vadd.f32 %v63, %v64
  %66 = vadd.xlane.f32.xlu0 %v65
  %v67 = vpop.xlane.xlu0 %66
  %v68 = vmul.f32 %v44, 0.00390625
  %v69 = vmul.f32 %v49, 0.00390625
  %v70 = vmul.f32 %v62, 0.00390625
  %v71 = vmul.f32 %v67, 0.00390625
  %v72 = vmul.f32 %v68, %v68
  %v73 = vmul.f32 %v69, %v69
  %v74 = vsub.f32 %v70, %v72
  %v75 = vsub.f32 %v71, %v73
  %v76 = vadd.f32 %v74, 1e-05
  %v77 = vadd.f32 %v75, 1e-05
  %v78 = vrsqrt.pop %v76
  %v79 = vrsqrt.pop %v77
  %v80 = vld [vmem:[%s3] sm:$0xf]
  %v81 = vmul.f32 %v78, %v80
  %v82 = vmul.f32 %v79, %v80
  %v83 = vld [vmem:[%s4] sm:$0xf]
  %v84 = vmul.f32 %v68, %v81
  %v85 = vmul.f32 %v69, %v82
  %v86 = vsub.f32 %v83, %v84
  %v87 = vsub.f32 %v83, %v85
  %v88 = vld [vmem:[%s5] sm:$0xf]
  %v89 = vmul.f32 %v88, %v68
  %v90 = vmul.f32 %v88, %v69
  %v91 = vld [vmem:[%s6] sm:$0xf]
  %v92 = vadd.f32 %v89, %v91
  %v93 = vadd.f32 %v90, %v91
  %95 = vset.pattern.permute.xlu0 0
  %96 = vperm.xlu0 %95, %v81
  %v97 = vpop.permute.xlu0 %96
  %99 = vset.pattern.permute.xlu0 0
  %100 = vperm.xlu0 %99, %v82
  %v101 = vpop.permute.xlu0 %100
  %v103 = vunpack.c.l.s4 839922192
  %v104 = vunpack.c.0.s8 %v103
  %v105 = vlaneseq
  %v106 = vshrl.u32 %v105, 7
  %v107 = vsub.s32 %v104, %v106
  %v108 = vrot.slane %v97, %v107
  %v110 = vunpack.c.l.s4 839922192
  %v111 = vunpack.c.0.s8 %v110
  %v112 = vlaneseq
  %v113 = vshrl.u32 %v112, 7
  %v114 = vsub.s32 %v111, %v113
  %v115 = vrot.slane %v101, %v114
  %v118 = vmul.f32 %v31, %v108
  %v119 = vmul.f32 %v32, %v115
  %121 = vset.pattern.permute.xlu0 0
  %122 = vperm.xlu0 %121, %v86
  %v123 = vpop.permute.xlu0 %122
  %125 = vset.pattern.permute.xlu0 0
  %126 = vperm.xlu0 %125, %v87
  %v127 = vpop.permute.xlu0 %126
  %v129 = vunpack.c.l.s4 839922192
  %v130 = vunpack.c.0.s8 %v129
  %v131 = vlaneseq
  %v132 = vshrl.u32 %v131, 7
  %v133 = vsub.s32 %v130, %v132
  %v134 = vrot.slane %v123, %v133
  %v136 = vunpack.c.l.s4 839922192
  %v137 = vunpack.c.0.s8 %v136
  %v138 = vlaneseq
  %v139 = vshrl.u32 %v138, 7
  %v140 = vsub.s32 %v137, %v139
  %v141 = vrot.slane %v127, %v140
  %v144 = vadd.f32 %v118, %v134
  %v145 = vadd.f32 %v119, %v141
  %v147 = vlaneseq
  %v148 = vshrl.u32 %v147, 7
  %v149 = vsub.s32 0, %v148
  %v150 = vrot.slane %v29, %v149
  %v151 = vlaneseq
  %v152 = vshrl.u32 %v151, 7
  %v153 = vsub.s32 1, %v152
  %v154 = vrot.slane %v29, %v153
  %v155 = vcombine.low %v150, %v154
  %v157 = vmul.f32 %v144, %v155
  %v158 = vmul.f32 %v145, %v155
  %v160 = vlaneseq
  %v161 = vshrl.u32 %v160, 7
  %v162 = vsub.s32 0, %v161
  %v163 = vrot.slane %v30, %v162
  %v164 = vlaneseq
  %v165 = vshrl.u32 %v164, 7
  %v166 = vsub.s32 1, %v165
  %v167 = vrot.slane %v30, %v166
  %v168 = vcombine.low %v163, %v167
  %v170 = vadd.f32 %v157, %v168
  %v171 = vadd.f32 %v158, %v168
  %v172 = vld [vmem:[%s7] sm:$0xf]
  %vm173 = vcmp.gt.f32.partialorder %v172, 0.5
  %v174 = vsel %vm173, 1, 0
  %175 = vset.pattern.permute.xlu0 0
  %176 = vperm.xlu0 %175, %v174
  %v177 = vpop.permute.xlu0 %176
  %vm178 = vcmp.eq.s32.totalorder %v177, 1
  %180 = vset.pattern.permute.xlu0 0
  %181 = vperm.xlu0 %180, %v92
  %v182 = vpop.permute.xlu0 %181
  %185 = vset.pattern.permute.xlu0 0
  %186 = vperm.xlu0 %185, %v93
  %v187 = vpop.permute.xlu0 %186
  %v191 = vcombine.high %v170, %v170
  %v192 = vcombine.high %v171, %v171
  %v195 = vsel %vm178, %v170, %v182
  %v196 = vsel %vm178, %v191, %v182
  %v197 = vsel %vm178, %v171, %v187
  %v198 = vsel %vm178, %v192, %v187
  %v199 = vxor.u32 %v195, 2147483648
  %v200 = vxor.u32 %v196, 2147483648
  %v201 = vxor.u32 %v197, 2147483648
  %v202 = vxor.u32 %v198, 2147483648
  %v203 = vmul.f32 %v199, 1.442695
  %v204 = vpow.pop %v203
  %v205 = vmul.f32 %v200, 1.442695
  %v206 = vpow.pop %v205
  %v207 = vmul.f32 %v201, 1.442695
  %v208 = vpow.pop %v207
  %v209 = vmul.f32 %v202, 1.442695
  %v210 = vpow.pop %v209
  %v211 = vadd.f32 %v204, 1.0
  %v212 = vadd.f32 %v206, 1.0
  %v213 = vadd.f32 %v208, 1.0
  %v214 = vadd.f32 %v210, 1.0
  %v215 = vrcp.pop %v211
  %v216 = vmul.f32 1.0, %v215
  %v217 = vrcp.pop %v212
  %v218 = vmul.f32 1.0, %v217
  %v219 = vrcp.pop %v213
  %v220 = vmul.f32 1.0, %v219
  %v221 = vrcp.pop %v214
  %v222 = vmul.f32 1.0, %v221
  %v227 = vcombine.low %v216, %v218
  %v228 = vcombine.low %v220, %v222
  %v231 = vmul.f32 %v31, %v227
  %v232 = vmul.f32 %v32, %v228
  %233 = vst [vmem:[%s8] sm:$0xff] %v231
  %234 = vst [vmem:[%s8 + $0x10] sm:$0xff] %v232
  %s235 = scalar_lea.vmem %s0, 8
  %v236 = vld [vmem:[%s235] sm:$0xff]
  %v237 = vld [vmem:[%s235 + $0x10] sm:$0xff]
  %v240 = vcombine.high %v236, %v236
  %v241 = vcombine.high %v237, %v237
  %v244 = vsel %vm39, %v236, 0.0
  %v245 = vsel %vm39, %v240, 0.0
  %v246 = vadd.f32 %v244, %v245
  %247 = vadd.xlane.f32.xlu0 %v246
  %v248 = vpop.xlane.xlu0 %247
  %v249 = vsel %vm39, %v237, 0.0
  %v250 = vsel %vm39, %v241, 0.0
  %v251 = vadd.f32 %v249, %v250
  %252 = vadd.xlane.f32.xlu0 %v251
  %v253 = vpop.xlane.xlu0 %252
  %v254 = vmul.f32 %v236, %v236
  %v255 = vmul.f32 %v237, %v237
  %v258 = vcombine.high %v254, %v254
  %v259 = vcombine.high %v255, %v255
  %v262 = vsel %vm39, %v254, 0.0
  %v263 = vsel %vm39, %v258, 0.0
  %v264 = vadd.f32 %v262, %v263
  %265 = vadd.xlane.f32.xlu0 %v264
  %v266 = vpop.xlane.xlu0 %265
  %v267 = vsel %vm39, %v255, 0.0
  %v268 = vsel %vm39, %v259, 0.0
  %v269 = vadd.f32 %v267, %v268
  %270 = vadd.xlane.f32.xlu0 %v269
  %v271 = vpop.xlane.xlu0 %270
  %v272 = vmul.f32 %v248, 0.00390625
  %v273 = vmul.f32 %v253, 0.00390625
  %v274 = vmul.f32 %v266, 0.00390625
  %v275 = vmul.f32 %v271, 0.00390625
  %v276 = vmul.f32 %v272, %v272
  %v277 = vmul.f32 %v273, %v273
  %v278 = vsub.f32 %v274, %v276
  %v279 = vsub.f32 %v275, %v277
  %v280 = vadd.f32 %v278, 1e-05
  %v281 = vadd.f32 %v279, 1e-05
  %v282 = vrsqrt.pop %v280
  %v283 = vrsqrt.pop %v281
  %s284 = scalar_lea.vmem %s3, 4
  %v285 = vld [vmem:[%s284] sm:$0xf]
  %v286 = vmul.f32 %v282, %v285
  %v287 = vmul.f32 %v283, %v285
  %s288 = scalar_lea.vmem %s4, 4
  %v289 = vld [vmem:[%s288] sm:$0xf]
  %v290 = vmul.f32 %v272, %v286
  %v291 = vmul.f32 %v273, %v287
  %v292 = vsub.f32 %v289, %v290
  %v293 = vsub.f32 %v289, %v291
  %s294 = scalar_lea.vmem %s5, 4
  %v295 = vld [vmem:[%s294] sm:$0xf]
  %v296 = vmul.f32 %v295, %v272
  %v297 = vmul.f32 %v295, %v273
  %s298 = scalar_lea.vmem %s6, 4
  %v299 = vld [vmem:[%s298] sm:$0xf]
  %v300 = vadd.f32 %v296, %v299
  %v301 = vadd.f32 %v297, %v299
  %303 = vset.pattern.permute.xlu0 0
  %304 = vperm.xlu0 %303, %v286
  %v305 = vpop.permute.xlu0 %304
  %307 = vset.pattern.permute.xlu0 0
  %308 = vperm.xlu0 %307, %v287
  %v309 = vpop.permute.xlu0 %308
  %v311 = vunpack.c.l.s4 839922192
  %v312 = vunpack.c.0.s8 %v311
  %v313 = vlaneseq
  %v314 = vshrl.u32 %v313, 7
  %v315 = vsub.s32 %v312, %v314
  %v316 = vrot.slane %v305, %v315
  %v318 = vunpack.c.l.s4 839922192
  %v319 = vunpack.c.0.s8 %v318
  %v320 = vlaneseq
  %v321 = vshrl.u32 %v320, 7
  %v322 = vsub.s32 %v319, %v321
  %v323 = vrot.slane %v309, %v322
  %v326 = vmul.f32 %v236, %v316
  %v327 = vmul.f32 %v237, %v323
  %329 = vset.pattern.permute.xlu0 0
  %330 = vperm.xlu0 %329, %v292
  %v331 = vpop.permute.xlu0 %330
  %333 = vset.pattern.permute.xlu0 0
  %334 = vperm.xlu0 %333, %v293
  %v335 = vpop.permute.xlu0 %334
  %v337 = vunpack.c.l.s4 839922192
  %v338 = vunpack.c.0.s8 %v337
  %v339 = vlaneseq
  %v340 = vshrl.u32 %v339, 7
  %v341 = vsub.s32 %v338, %v340
  %v342 = vrot.slane %v331, %v341
  %v344 = vunpack.c.l.s4 839922192
  %v345 = vunpack.c.0.s8 %v344
  %v346 = vlaneseq
  %v347 = vshrl.u32 %v346, 7
  %v348 = vsub.s32 %v345, %v347
  %v349 = vrot.slane %v335, %v348
  %v352 = vadd.f32 %v326, %v342
  %v353 = vadd.f32 %v327, %v349
  %v354 = vmul.f32 %v352, %v155
  %v355 = vmul.f32 %v353, %v155
  %v356 = vadd.f32 %v354, %v168
  %v357 = vadd.f32 %v355, %v168
  %s358 = scalar_lea.vmem %s7, 4
  %v359 = vld [vmem:[%s358] sm:$0xf]
  %vm360 = vcmp.gt.f32.partialorder %v359, 0.5
  %v361 = vsel %vm360, 1, 0
  %362 = vset.pattern.permute.xlu0 0
  %363 = vperm.xlu0 %362, %v361
  %v364 = vpop.permute.xlu0 %363
  %vm365 = vcmp.eq.s32.totalorder %v364, 1
  %367 = vset.pattern.permute.xlu0 0
  %368 = vperm.xlu0 %367, %v300
  %v369 = vpop.permute.xlu0 %368
  %372 = vset.pattern.permute.xlu0 0
  %373 = vperm.xlu0 %372, %v301
  %v374 = vpop.permute.xlu0 %373
  %v378 = vcombine.high %v356, %v356
  %v379 = vcombine.high %v357, %v357
  %v382 = vsel %vm365, %v356, %v369
  %v383 = vsel %vm365, %v378, %v369
  %v384 = vsel %vm365, %v357, %v374
  %v385 = vsel %vm365, %v379, %v374
  %v386 = vxor.u32 %v382, 2147483648
  %v387 = vxor.u32 %v383, 2147483648
  %v388 = vxor.u32 %v384, 2147483648
  %v389 = vxor.u32 %v385, 2147483648
  %v390 = vmul.f32 %v386, 1.442695
  %v391 = vpow.pop %v390
  %v392 = vmul.f32 %v387, 1.442695
  %v393 = vpow.pop %v392
  %v394 = vmul.f32 %v388, 1.442695
  %v395 = vpow.pop %v394
  %v396 = vmul.f32 %v389, 1.442695
  %v397 = vpow.pop %v396
  %v398 = vadd.f32 %v391, 1.0
  %v399 = vadd.f32 %v393, 1.0
  %v400 = vadd.f32 %v395, 1.0
  %v401 = vadd.f32 %v397, 1.0
  %v402 = vrcp.pop %v398
  %v403 = vmul.f32 1.0, %v402
  %v404 = vrcp.pop %v399
  %v405 = vmul.f32 1.0, %v404
  %v406 = vrcp.pop %v400
  %v407 = vmul.f32 1.0, %v406
  %v408 = vrcp.pop %v401
  %v409 = vmul.f32 1.0, %v408
  %v414 = vcombine.low %v403, %v405
  %v415 = vcombine.low %v407, %v409
  %v418 = vmul.f32 %v236, %v414
  %v419 = vmul.f32 %v237, %v415
  %420 = vst [vmem:[%s8 + $0x8] sm:$0xff] %v418
  %421 = vst [vmem:[%s8 + $0x18] sm:$0xff] %v419
  // Predicated region
  $region34: #{sa_layer2_forward.1} parent=0 // pred_check
    _
  $region35: #{sa_layer2_forward.1} parent=0 // pred_check_branch
    %423 = sbr.rel (0) target = $region37
  $region36: #{sa_layer2_forward.1} parent=0 // pred_region
    _
  $region37: #{sa_layer2_forward.1} parent=0 // pred_fallthru
    _
  // Predicated region
  $region38: #{sa_layer2_forward.1} parent=0 // pred_check
    _
  $region39: #{sa_layer2_forward.1} parent=0 // pred_check_branch
    %425 = sbr.rel (0) target = $region41
  $region40: #{sa_layer2_forward.1} parent=0 // pred_region
    _
  $region41: #{sa_layer2_forward.1} parent=0 // pred_fallthru
    _

</llo_original>
